<compile_context>
chip_gen: v7x
topology: tpu7x:2x2x1
jax: 0.10.0
libtpu: 0.0.40
codegen_flags: <defaults>
</compile_context>

<pallas_src>
import functools

import numpy as np
import jax
import jax.numpy as jnp
from jax.experimental import pallas as pl
from jax.experimental.pallas import tpu as pltpu

kernel_list = [[1, 2, 3, 4, 5, 6, 7, 8, 9, 10, 11, 12, 13, 14, 15, 16, 17, 18, 19, 20, 21, 22, 23, 24, 25, 26, 27, 28, 29, 30, 31, 32], [2, -1, 4, -3, 6, -5, -8, 7, 10, -9, -12, 11, -14, 13, 16, -15, 18, -17, -20, 19, -22, 21, 24, -23, -26, 25, 28, -27, 30, -29, -32, 31], [3, -4, -1, 2, 7, 8, -5, -6, 11, 12, -9, -10, -15, -16, 13, 14, 19, 20, -17, -18, -23, -24, 21, 22, -27, -28, 25, 26, 31, 32, -29, -30], [4, 3, -2, -1, 8, -7, 6, -5, 12, -11, 10, -9, -16, 15, -14, 13, 20, -19, 18, -17, -24, 23, -22, 21, -28, 27, -26, 25, 32, -31, 30, -29], [5, -6, -7, -8, -1, 2, 3, 4, 13, 14, 15, 16, -9, -10, -11, -12, 21, 22, 23, 24, -17, -18, -19, -20, -29, -30, -31, -32, 25, 26, 27, 28], [6, 5, -8, 7, -2, -1, -4, 3, 14, -13, 16, -15, 10, -9, 12, -11, 22, -21, 24, -23, 18, -17, 20, -19, -30, 29, -32, 31, -26, 25, -28, 27], [7, 8, 5, -6, -3, 4, -1, -2, 15, -16, -13, 14, 11, -12, -9, 10, 23, -24, -21, 22, 19, -20, -17, 18, -31, 32, 29, -30, -27, 28, 25, -26], [8, -7, 6, 5, -4, -3, 2, -1, 16, 15, -14, -13, 12, 11, -10, -9, 24, 23, -22, -21, 20, 19, -18, -17, -32, -31, 30, 29, -28, -27, 26, 25], [9, -10, -11, -12, -13, -14, -15, -16, -1, 2, 3, 4, 5, 6, 7, 8, 25, 26, 27, 28, 29, 30, 31, 32, -17, -18, -19, -20, -21, -22, -23, -24], [10, 9, -12, 11, -14, 13, 16, -15, -2, -1, -4, 3, -6, 5, 8, -7, 26, -25, 28, -27, 30, -29, -32, 31, 18, -17, 20, -19, 22, -21, -24, 23], [11, 12, 9, -10, -15, -16, 13, 14, -3, 4, -1, -2, -7, -8, 5, 6, 27, -28, -25, 26, 31, 32, -29, -30, 19, -20, -17, 18, 23, 24, -21, -22], [12, -11, 10, 9, -16, 15, -14, 13, -4, -3, 2, -1, -8, 7, -6, 5, 28, 27, -26, -25, 32, -31, 30, -29, 20, 19, -18, -17, 24, -23, 22, -21], [13, 14, 15, 16, 9, -10, -11, -12, -5, 6, 7, 8, -1, -2, -3, -4, 29, -30, -31, -32, -25, 26, 27, 28, 21, -22, -23, -24, -17, 18, 19, 20], [14, -13, 16, -15, 10, 9, 12, -11, -6, -5, 8, -7, 2, -1, 4, -3, 30, 29, -32, 31, -26, -25, -28, 27, 22, 21, -24, 23, -18, -17, -20, 19], [15, -16, -13, 14, 11, -12, 9, 10, -7, -8, -5, 6, 3, -4, -1, 2, 31, 32, 29, -30, -27, 28, -25, -26, 23, 24, 21, -22, -19, 20, -17, -18], [16, 15, -14, -13, 12, 11, -10, 9, -8, 7, -6, -5, 4, 3, -2, -1, 32, -31, 30, 29, -28, -27, 26, -25, 24, -23, 22, 21, -20, -19, 18, -17], [17, -18, -19, -20, -21, -22, -23, -24, -25, -26, -27, -28, -29, -30, -31, -32, -1, 2, 3, 4, 5, 6, 7, 8, 9, 10, 11, 12, 13, 14, 15, 16], [18, 17, -20, 19, -22, 21, 24, -23, -26, 25, 28, -27, 30, -29, -32, 31, -2, -1, -4, 3, -6, 5, 8, -7, -10, 9, 12, -11, 14, -13, -16, 15], [19, 20, 17, -18, -23, -24, 21, 22, -27, -28, 25, 26, 31, 32, -29, -30, -3, 4, -1, -2, -7, -8, 5, 6, -11, -12, 9, 10, 15, 16, -13, -14], [20, -19, 18, 17, -24, 23, -22, 21, -28, 27, -26, 25, 32, -31, 30, -29, -4, -3, 2, -1, -8, 7, -6, 5, -12, 11, -10, 9, 16, -15, 14, -13], [21, 22, 23, 24, 17, -18, -19, -20, -29, -30, -31, -32, 25, 26, 27, 28, -5, 6, 7, 8, -1, -2, -3, -4, -13, -14, -15, -16, 9, 10, 11, 12], [22, -21, 24, -23, 18, 17, 20, -19, -30, 29, -32, 31, -26, 25, -28, 27, -6, -5, 8, -7, 2, -1, 4, -3, -14, 13, -16, 15, -10, 9, -12, 11], [23, -24, -21, 22, 19, -20, 17, 18, -31, 32, 29, -30, -27, 28, 25, -26, -7, -8, -5, 6, 3, -4, -1, 2, -15, 16, 13, -14, -11, 12, 9, -10], [24, 23, -22, -21, 20, 19, -18, 17, -32, -31, 30, 29, -28, -27, 26, 25, -8, 7, -6, -5, 4, 3, -2, -1, -16, -15, 14, 13, -12, -11, 10, 9], [25, 26, 27, 28, 29, 30, 31, 32, 17, -18, -19, -20, -21, -22, -23, -24, -9, 10, 11, 12, 13, 14, 15, 16, -1, -2, -3, -4, -5, -6, -7, -8], [26, -25, 28, -27, 30, -29, -32, 31, 18, 17, 20, -19, 22, -21, -24, 23, -10, -9, 12, -11, 14, -13, -16, 15, 2, -1, 4, -3, 6, -5, -8, 7], [27, -28, -25, 26, 31, 32, -29, -30, 19, -20, 17, 18, 23, 24, -21, -22, -11, -12, -9, 10, 15, 16, -13, -14, 3, -4, -1, 2, 7, 8, -5, -6], [28, 27, -26, -25, 32, -31, 30, -29, 20, 19, -18, 17, 24, -23, 22, -21, -12, 11, -10, -9, 16, -15, 14, -13, 4, 3, -2, -1, 8, -7, 6, -5], [29, -30, -31, -32, -25, 26, 27, 28, 21, -22, -23, -24, 17, 18, 19, 20, -13, -14, -15, -16, -9, 10, 11, 12, 5, -6, -7, -8, -1, 2, 3, 4], [30, 29, -32, 31, -26, -25, -28, 27, 22, 21, -24, 23, -18, 17, -20, 19, -14, 13, -16, 15, -10, -9, -12, 11, 6, 5, -8, 7, -2, -1, -4, 3], [31, 32, 29, -30, -27, 28, -25, -26, 23, 24, 21, -22, -19, 20, 17, -18, -15, 16, 13, -14, -11, 12, -9, -10, 7, 8, 5, -6, -3, 4, -1, -2], [32, -31, 30, 29, -28, -27, 26, -25, 24, -23, 22, 21, -20, -19, 18, 17, -16, -15, 14, 13, -12, -11, 10, -9, 8, -7, 6, 5, -4, -3, 2, -1]]

_K = np.asarray(kernel_list, dtype=np.int32)        # (32, 32), K[j][i]
_IDX = np.abs(_K) - 1                                # block source index
_SGN = np.sign(_K).astype(np.float32)                # block sign


def make_quaternion_mul(W):
    """JAX port of make_quaternion_mul (parameter setup, not the hot path).

    W: (r, c) with c % 32 == 0  ->  Hamilton matrix of shape (32*r, c).
    Block (j, i) = sign(K[j][i]) * W[:, (|K[j][i]|-1)*d : |K[j][i]|*d],  d = c // 32.
    """
    r, c = W.shape
    d = c // 32
    Wr = W.reshape(r, 32, d)                                  # chunks along axis 1
    gathered = Wr[:, _IDX, :]                                 # (r, 32, 32, d)
    signed = gathered * jnp.asarray(_SGN)[None, :, :, None]   # apply signs
    return jnp.transpose(signed, (1, 0, 2, 3)).reshape(32 * r, 32 * d)


def _round_up(v, m):
    return ((v + m - 1) // m) * m


def _dqgnn_kernel(x_ref, adj_ref, w_ref, gamma_ref, beta_ref, o_ref,
                  support_ref, outcache_ref, mean_ref, rstd_ref,
                  *, n_true, eps):
    """Grid = (phase, row_tile).

    phase 0: (once) support = x @ W into persistent VMEM scratch;
             per tile: outcache[tile] = adj_tile @ support
    phase 1: (once) global BatchNorm statistics over the true N rows;
             per tile: o_tile = tanh((outcache[tile] - mean) * rstd * gamma + beta)
    """
    p = pl.program_id(0)
    t = pl.program_id(1)
    tile_n = o_ref.shape[0]
    n_pad = outcache_ref.shape[0]
    row_start = pl.multiple_of(t * tile_n, 8)

    # --- one-time: support = x @ [[A_h, B_h], [0, A_h]]  (single MXU pass) ---
    @pl.when((p == 0) & (t == 0))
    def _():
        support_ref[...] = jnp.dot(
            x_ref[...], w_ref[...],
            preferred_element_type=jnp.float32).astype(support_ref.dtype)

    # --- phase 0: aggregate one adjacency row tile into the resident out cache ---
    @pl.when(p == 0)
    def _():
        outcache_ref[pl.ds(row_start, tile_n), :] = jnp.dot(
            adj_ref[...], support_ref[...],
            preferred_element_type=jnp.float32)

    # --- phase 1 (first tile): global batch statistics (biased variance, as in BN train) ---
    @pl.when((p == 1) & (t == 0))
    def _():
        full = outcache_ref[...]
        inv_n = 1.0 / float(n_true)
        mean = jnp.sum(full, axis=0, keepdims=True) * inv_n
        centered = full - mean
        if n_pad != n_true:
            # Zero-padded rows must not contribute to the variance.
            row_ids = jax.lax.broadcasted_iota(jnp.int32, full.shape, 0)
            centered = jnp.where(row_ids < n_true, centered, 0.0)
        var = jnp.sum(centered * centered, axis=0, keepdims=True) * inv_n
        mean_ref[...] = mean
        rstd_ref[...] = jax.lax.rsqrt(var + eps)

    # --- phase 1: normalize + tanh, full-width lane-dense store ---
    @pl.when(p == 1)
    def _():
        out_tile = outcache_ref[pl.ds(row_start, tile_n), :]
        normed = (out_tile - mean_ref[...]) * rstd_ref[...]
        o_ref[...] = jnp.tanh(normed * gamma_ref[...] + beta_ref[...])


def dqgnn_forward(x, adj, A, B, gamma, beta, *, tile_rows=512,
                  compute_dtype=jnp.float32, bn_eps=1e-5):
    """x: (N, Din) f32, adj: (N, N) f32 dense, A/B: (Din//64, Dout//2), gamma/beta: (Dout,)."""
    A_ham = make_quaternion_mul(A)              # (Din//2, Dout//2)
    B_ham = make_quaternion_mul(B)
    half_in, half_out = A_ham.shape
    N, Din = x.shape
    assert Din == 2 * half_in
    Dout = 2 * half_out

    # Fold the dual-quaternion product into one weight:
    #   x @ [[A_h, B_h], [0, A_h]] = [C@A_h, C@B_h + D@A_h] = support
    zeros = jnp.zeros_like(A_ham)
    W = jnp.concatenate(
        [jnp.concatenate([A_ham, B_ham], axis=1),
         jnp.concatenate([zeros, A_ham], axis=1)], axis=0)    # (Din, Dout)

    # Pad features to a 128-lane multiple (dense stores, full MXU lane use) and
    # pad nodes to a multiple of the row tile (zero rows -> zero outputs, masked in BN).
    Dout_pad = _round_up(Dout, 128)
    tile_n = min(tile_rows, _round_up(N, 8))
    N_pad = _round_up(N, tile_n)
    num_tiles = N_pad // tile_n

    W_pad = jnp.pad(W, ((0, 0), (0, Dout_pad - Dout))).astype(compute_dtype)
    gamma_pad = jnp.pad(gamma.reshape(1, -1).astype(jnp.float32),
                        ((0, 0), (0, Dout_pad - Dout)), constant_values=1.0)
    beta_pad = jnp.pad(beta.reshape(1, -1).astype(jnp.float32),
                       ((0, 0), (0, Dout_pad - Dout)))
    x_pad = jnp.pad(x, ((0, N_pad - N), (0, 0))).astype(compute_dtype)
    adj_pad = jnp.pad(adj, ((0, N_pad - N), (0, N_pad - N))).astype(compute_dtype)

    kernel = functools.partial(_dqgnn_kernel, n_true=N, eps=bn_eps)

    itemsize = jnp.dtype(compute_dtype).itemsize
    cost = pl.CostEstimate(
        flops=int(2 * N_pad * Din * Dout_pad + 2 * N_pad * N_pad * Dout_pad),
        transcendentals=int(N_pad * Dout_pad + Dout_pad),
        bytes_accessed=int(itemsize * (N_pad * N_pad + N_pad * Din + Din * Dout_pad)
                           + 4 * N_pad * Dout_pad),
    )

    out_pad = pl.pallas_call(
        kernel,
        out_shape=jax.ShapeDtypeStruct((N_pad, Dout_pad), jnp.float32),
        grid=(2, num_tiles),
        in_specs=[
            # x, W, gamma, beta: constant block index -> DMA'd once, stay resident.
            pl.BlockSpec((N_pad, Din), lambda p, t: (0, 0)),
            # adj: streamed by row tile in phase 0 (double-buffered); pinned to
            # block 0 in phase 1 so it is not re-streamed.
            pl.BlockSpec((tile_n, N_pad), lambda p, t: (t * (1 - p), 0)),
            pl.BlockSpec((Din, Dout_pad), lambda p, t: (0, 0)),
            pl.BlockSpec((1, Dout_pad), lambda p, t: (0, 0)),
            pl.BlockSpec((1, Dout_pad), lambda p, t: (0, 0)),
        ],
        # Output tiles are only produced in phase 1; in phase 0 keep the block
        # index parked at 0 so no garbage writebacks are issued.
        out_specs=pl.BlockSpec((tile_n, Dout_pad), lambda p, t: (t * p, 0)),
        scratch_shapes=[
            pltpu.VMEM((N_pad, Dout_pad), compute_dtype),   # support (persistent)
            pltpu.VMEM((N_pad, Dout_pad), jnp.float32),     # raw aggregated output cache
            pltpu.VMEM((1, Dout_pad), jnp.float32),         # BN mean
            pltpu.VMEM((1, Dout_pad), jnp.float32),         # BN 1/sqrt(var+eps)
        ],
        # Both axes must be "arbitrary": the row-tile axis carries the shared
        # support/outcache scratch and the global-BN dependency.
        # TODO(synk): a stats-split two-kernel version could mark the row axis
        # "parallel" for v7x's two TensorCores.
        compiler_params=pltpu.CompilerParams(
            dimension_semantics=("arbitrary", "arbitrary")),
        cost_estimate=cost,
    )(x_pad, adj_pad, W_pad, gamma_pad, beta_pad)

    return out_pad[:N, :Dout]


def dqgnn_reference(x, adj, A, B, gamma, beta):
    """Pure-JAX reference of the PyTorch forward for verification."""
    half = x.shape[1] // 2
    C, D = x[:, :half], x[:, half:]
    A_h = make_quaternion_mul(A)
    B_h = make_quaternion_mul(B)
    support = jnp.concatenate([C @ A_h, D @ A_h + C @ B_h], axis=1)
    out = adj @ support
    mean = jnp.mean(out, axis=0, keepdims=True)
    var = jnp.mean((out - mean) ** 2, axis=0, keepdims=True)
    out = (out - mean) / jnp.sqrt(var + 1e-5) * gamma[None, :] + beta[None, :]
    return jnp.tanh(out)


def _make_inputs(key, n_nodes, in_features_arg, out_features):
    k_a, k_b, k_x, k_adj = jax.random.split(key, 4)
    din = 8 * in_features_arg                       # actual width required by the 32-kernel
    a_rows, a_cols = in_features_arg // 8, out_features // 2
    stdv = float(np.sqrt(6.0 / (a_rows + a_cols)))  # reset_parameters()
    A = jax.random.uniform(k_a, (a_rows, a_cols), jnp.float32, -stdv, stdv)
    B = jax.random.uniform(k_b, (a_rows, a_cols), jnp.float32, -stdv, stdv)
    gamma = jnp.ones((out_features,), jnp.float32)  # BatchNorm1d weight init
    beta = jnp.zeros((out_features,), jnp.float32)  # BatchNorm1d bias init
    x = jax.random.normal(k_x, (n_nodes, din), jnp.float32)
    adj_raw = jax.random.uniform(k_adj, (n_nodes, n_nodes), jnp.float32)
    adj = adj_raw / jnp.sum(adj_raw, axis=1, keepdims=True)   # row-normalized dense adjacency
    # TODO(synk): torch.spmm takes a sparse adjacency; here it is a dense matmul.
    return x, adj, A, B, gamma, beta


if __name__ == "__main__":
    in_features_arg, out_features = 16, 64

    # Small test, matching the module's toy configuration (N=8, Din=128, Dout=64).
    x, adj, A, B, gamma, beta = _make_inputs(jax.random.PRNGKey(0), 8,
                                             in_features_arg, out_features)
    out = jax.block_until_ready(dqgnn_forward(x, adj, A, B, gamma, beta))
    ref = jax.block_until_ready(dqgnn_reference(x, adj, A, B, gamma, beta))
    assert out.shape == (8, out_features)
    np.testing.assert_allclose(np.asarray(out), np.asarray(ref), rtol=1e-4, atol=2e-5)

    # Multi-tile test: exercises the (phase, row-tile) grid, row padding and masked BN stats.
    x2, adj2, A2, B2, g2, b2 = _make_inputs(jax.random.PRNGKey(1), 40,
                                            in_features_arg, out_features)
    out2 = jax.block_until_ready(dqgnn_forward(x2, adj2, A2, B2, g2, b2, tile_rows=16))
    ref2 = jax.block_until_ready(dqgnn_reference(x2, adj2, A2, B2, g2, b2))
    assert out2.shape == (40, out_features)
    np.testing.assert_allclose(np.asarray(out2), np.asarray(ref2), rtol=1e-4, atol=2e-5)

    print("KERNEL_OK")
</pallas_src>

<mosaic_0001>
module attributes {stable_mosaic.version = 11 : i64} {
  func.func @_dqgnn_kernel(%arg0: i32, %arg1: i32, %arg2: memref<8x128xf32, #tpu.memory_space<vmem>>, %arg3: memref<8x8xf32, #tpu.memory_space<vmem>>, %arg4: memref<128x128xf32, #tpu.memory_space<vmem>>, %arg5: memref<1x128xf32, #tpu.memory_space<vmem>>, %arg6: memref<1x128xf32, #tpu.memory_space<vmem>>, %arg7: memref<8x128xf32, #tpu.memory_space<vmem>>, %arg8: memref<8x128xf32, #tpu.memory_space<vmem>>, %arg9: memref<8x128xf32, #tpu.memory_space<vmem>>, %arg10: memref<1x128xf32, #tpu.memory_space<vmem>>, %arg11: memref<1x128xf32, #tpu.memory_space<vmem>>) attributes {dimension_semantics = [#tpu.dimension_semantics<arbitrary>, #tpu.dimension_semantics<arbitrary>], iteration_bounds = array<i64: 2, 1>, scalar_prefetch = 0 : i64, scratch_operands = 4 : i64, tpu.core_type = #tpu.core_type<tc>, window_params = [{pipeline_mode = #tpu.pipeline_mode<synchronous>, transform_indices = @transform_0, window_bounds = array<i64: 8, 128>}, {transform_indices = @transform_1, window_bounds = array<i64: 8, 8>}, {pipeline_mode = #tpu.pipeline_mode<synchronous>, transform_indices = @transform_2, window_bounds = array<i64: 128, 128>}, {pipeline_mode = #tpu.pipeline_mode<synchronous>, transform_indices = @transform_3, window_bounds = array<i64: 1, 128>}, {pipeline_mode = #tpu.pipeline_mode<synchronous>, transform_indices = @transform_4, window_bounds = array<i64: 1, 128>}, {transform_indices = @transform_5, window_bounds = array<i64: 8, 128>}]} {
    %c8_i32 = arith.constant 8 : i32
    %0 = arith.muli %arg1, %c8_i32 : i32
    %1 = tpu.assume_multiple %0, 8 : i32
    %c0_i32 = arith.constant 0 : i32
    %2 = arith.cmpi eq, %arg0, %c0_i32 : i32
    %c0_i32_0 = arith.constant 0 : i32
    %3 = arith.cmpi eq, %arg1, %c0_i32_0 : i32
    %4 = arith.andi %2, %3 : i1
    %5 = arith.extui %4 : i1 to i32
    %c0_i32_1 = arith.constant 0 : i32
    %6 = arith.cmpi ne, %5, %c0_i32_1 : i32
    scf.if %6 {
      %c0 = arith.constant 0 : index
      %c0_8 = arith.constant 0 : index
      %18 = vector.load %arg2[%c0, %c0_8] : memref<8x128xf32, #tpu.memory_space<vmem>>, vector<8x128xf32>
      %c0_9 = arith.constant 0 : index
      %c0_10 = arith.constant 0 : index
      %19 = vector.load %arg4[%c0_9, %c0_10] : memref<128x128xf32, #tpu.memory_space<vmem>>, vector<128x128xf32>
      %cst = arith.constant dense<0.000000e+00> : vector<8x128xf32>
      %20 = tpu.matmul %18, %19, %cst {dimension_numbers = #tpu.dot_dimension_numbers<[1], [0], [0], [1], [0, 0, 1, 1], [], []>} : vector<8x128xf32>, vector<128x128xf32>, vector<8x128xf32> -> vector<8x128xf32>
      %c0_11 = arith.constant 0 : index
      %c0_12 = arith.constant 0 : index
      %21 = vector.load %arg8[%c0_11, %c0_12] : memref<8x128xf32, #tpu.memory_space<vmem>>, vector<8x128xf32>
      tpu.vector_store %arg8[%c0_11, %c0_12], %20 {strides = array<i32>} : memref<8x128xf32, #tpu.memory_space<vmem>>, vector<8x128xf32>,
    } else {
    }
    %c0_i32_2 = arith.constant 0 : i32
    %7 = arith.cmpi eq, %arg0, %c0_i32_2 : i32
    %8 = arith.extui %7 : i1 to i32
    %c0_i32_3 = arith.constant 0 : i32
    %9 = arith.cmpi ne, %8, %c0_i32_3 : i32
    scf.if %9 {
      %c0 = arith.constant 0 : index
      %c0_8 = arith.constant 0 : index
      %18 = vector.load %arg3[%c0, %c0_8] : memref<8x8xf32, #tpu.memory_space<vmem>>, vector<8x8xf32>
      %c0_9 = arith.constant 0 : index
      %c0_10 = arith.constant 0 : index
      %19 = vector.load %arg8[%c0_9, %c0_10] : memref<8x128xf32, #tpu.memory_space<vmem>>, vector<8x128xf32>
      %cst = arith.constant dense<0.000000e+00> : vector<8x128xf32>
      %20 = tpu.matmul %18, %19, %cst {dimension_numbers = #tpu.dot_dimension_numbers<[1], [0], [0], [1], [0, 0, 1, 1], [], []>} : vector<8x8xf32>, vector<8x128xf32>, vector<8x128xf32> -> vector<8x128xf32>
      %21 = arith.index_cast %1 : i32 to index
      %c0_11 = arith.constant 0 : index
      %22 = vector.load %arg9[%21, %c0_11] : memref<8x128xf32, #tpu.memory_space<vmem>>, vector<8x128xf32>
      tpu.vector_store %arg9[%21, %c0_11], %20 {strides = array<i32>} : memref<8x128xf32, #tpu.memory_space<vmem>>, vector<8x128xf32>,
    } else {
    }
    %c1_i32 = arith.constant 1 : i32
    %10 = arith.cmpi eq, %arg0, %c1_i32 : i32
    %c0_i32_4 = arith.constant 0 : i32
    %11 = arith.cmpi eq, %arg1, %c0_i32_4 : i32
    %12 = arith.andi %10, %11 : i1
    %13 = arith.extui %12 : i1 to i32
    %c0_i32_5 = arith.constant 0 : i32
    %14 = arith.cmpi ne, %13, %c0_i32_5 : i32
    scf.if %14 {
      %c0 = arith.constant 0 : index
      %c0_8 = arith.constant 0 : index
      %18 = vector.load %arg9[%c0, %c0_8] : memref<8x128xf32, #tpu.memory_space<vmem>>, vector<8x128xf32>
      %cst = arith.constant dense<0.000000e+00> : vector<128xf32>
      %19 = vector.multi_reduction <add>, %18, %cst [0] : vector<8x128xf32> to vector<128xf32>
      %20 = vector.shape_cast %19 : vector<128xf32> to vector<1x128xf32>
      %cst_9 = arith.constant 1.250000e-01 : f32
      %21 = vector.broadcast %cst_9 : f32 to vector<1x128xf32>
      %22 = arith.mulf %20, %21 : vector<1x128xf32>
      %23 = vector.broadcast %22 : vector<1x128xf32> to vector<8x128xf32>
      %24 = arith.subf %18, %23 : vector<8x128xf32>
      %25 = arith.mulf %24, %24 : vector<8x128xf32>
      %cst_10 = arith.constant dense<0.000000e+00> : vector<128xf32>
      %26 = vector.multi_reduction <add>, %25, %cst_10 [0] : vector<8x128xf32> to vector<128xf32>
      %27 = vector.shape_cast %26 : vector<128xf32> to vector<1x128xf32>
      %cst_11 = arith.constant 1.250000e-01 : f32
      %28 = vector.broadcast %cst_11 : f32 to vector<1x128xf32>
      %29 = arith.mulf %27, %28 : vector<1x128xf32>
      %c0_12 = arith.constant 0 : index
      %c0_13 = arith.constant 0 : index
      %30 = vector.load %arg10[%c0_12, %c0_13] : memref<1x128xf32, #tpu.memory_space<vmem>>, vector<1x128xf32>
      tpu.vector_store %arg10[%c0_12, %c0_13], %22 {strides = array<i32>} : memref<1x128xf32, #tpu.memory_space<vmem>>, vector<1x128xf32>,
      %cst_14 = arith.constant 9.99999974E-6 : f32
      %31 = vector.broadcast %cst_14 : f32 to vector<1x128xf32>
      %32 = arith.addf %29, %31 : vector<1x128xf32>
      %33 = math.rsqrt %32 : vector<1x128xf32>
      %c0_15 = arith.constant 0 : index
      %c0_16 = arith.constant 0 : index
      %34 = vector.load %arg11[%c0_15, %c0_16] : memref<1x128xf32, #tpu.memory_space<vmem>>, vector<1x128xf32>
      tpu.vector_store %arg11[%c0_15, %c0_16], %33 {strides = array<i32>} : memref<1x128xf32, #tpu.memory_space<vmem>>, vector<1x128xf32>,
    } else {
    }
    %c1_i32_6 = arith.constant 1 : i32
    %15 = arith.cmpi eq, %arg0, %c1_i32_6 : i32
    %16 = arith.extui %15 : i1 to i32
    %c0_i32_7 = arith.constant 0 : i32
    %17 = arith.cmpi ne, %16, %c0_i32_7 : i32
    scf.if %17 {
      %18 = arith.index_cast %1 : i32 to index
      %c0 = arith.constant 0 : index
      %19 = vector.load %arg9[%18, %c0] : memref<8x128xf32, #tpu.memory_space<vmem>>, vector<8x128xf32>
      %c0_8 = arith.constant 0 : index
      %c0_9 = arith.constant 0 : index
      %20 = vector.load %arg10[%c0_8, %c0_9] : memref<1x128xf32, #tpu.memory_space<vmem>>, vector<1x128xf32>
      %21 = vector.broadcast %20 : vector<1x128xf32> to vector<8x128xf32>
      %22 = arith.subf %19, %21 : vector<8x128xf32>
      %c0_10 = arith.constant 0 : index
      %c0_11 = arith.constant 0 : index
      %23 = vector.load %arg11[%c0_10, %c0_11] : memref<1x128xf32, #tpu.memory_space<vmem>>, vector<1x128xf32>
      %24 = vector.broadcast %23 : vector<1x128xf32> to vector<8x128xf32>
      %25 = arith.mulf %22, %24 : vector<8x128xf32>
      %c0_12 = arith.constant 0 : index
      %c0_13 = arith.constant 0 : index
      %26 = vector.load %arg5[%c0_12, %c0_13] : memref<1x128xf32, #tpu.memory_space<vmem>>, vector<1x128xf32>
      %27 = vector.broadcast %26 : vector<1x128xf32> to vector<8x128xf32>
      %28 = arith.mulf %25, %27 : vector<8x128xf32>
      %c0_14 = arith.constant 0 : index
      %c0_15 = arith.constant 0 : index
      %29 = vector.load %arg6[%c0_14, %c0_15] : memref<1x128xf32, #tpu.memory_space<vmem>>, vector<1x128xf32>
      %30 = vector.broadcast %29 : vector<1x128xf32> to vector<8x128xf32>
      %31 = arith.addf %28, %30 : vector<8x128xf32>
      %32 = math.tanh %31 : vector<8x128xf32>
      %c0_16 = arith.constant 0 : index
      %c0_17 = arith.constant 0 : index
      %33 = vector.load %arg7[%c0_16, %c0_17] : memref<8x128xf32, #tpu.memory_space<vmem>>, vector<8x128xf32>
      tpu.vector_store %arg7[%c0_16, %c0_17], %32 {strides = array<i32>} : memref<8x128xf32, #tpu.memory_space<vmem>>, vector<8x128xf32>,
    } else {
    }
    return
  }
  func.func @transform_0(%arg0: i32, %arg1: i32) -> (i32, i32) {
    %c0_i32 = arith.constant 0 : i32
    %c0_i32_0 = arith.constant 0 : i32
    %c0_i32_1 = arith.constant 0 : i32
    return %c0_i32, %c0_i32_0 : i32, i32
  }
  func.func @transform_1(%arg0: i32, %arg1: i32) -> (i32, i32) {
    %c1_i32 = arith.constant 1 : i32
    %0 = arith.subi %c1_i32, %arg0 : i32
    %1 = arith.muli %arg1, %0 : i32
    %c0_i32 = arith.constant 0 : i32
    %c0_i32_0 = arith.constant 0 : i32
    return %1, %c0_i32 : i32, i32
  }
  func.func @transform_2(%arg0: i32, %arg1: i32) -> (i32, i32) {
    %c0_i32 = arith.constant 0 : i32
    %c0_i32_0 = arith.constant 0 : i32
    %c0_i32_1 = arith.constant 0 : i32
    return %c0_i32, %c0_i32_0 : i32, i32
  }
  func.func @transform_3(%arg0: i32, %arg1: i32) -> (i32, i32) {
    %c0_i32 = arith.constant 0 : i32
    %c0_i32_0 = arith.constant 0 : i32
    %c0_i32_1 = arith.constant 0 : i32
    return %c0_i32, %c0_i32_0 : i32, i32
  }
  func.func @transform_4(%arg0: i32, %arg1: i32) -> (i32, i32) {
    %c0_i32 = arith.constant 0 : i32
    %c0_i32_0 = arith.constant 0 : i32
    %c0_i32_1 = arith.constant 0 : i32
    return %c0_i32, %c0_i32_0 : i32, i32
  }
  func.func @transform_5(%arg0: i32, %arg1: i32) -> (i32, i32) {
    %0 = arith.muli %arg1, %arg0 : i32
    %c0_i32 = arith.constant 0 : i32
    %c0_i32_0 = arith.constant 0 : i32
    return %0, %c0_i32 : i32, i32
  }
}

</mosaic_0001>

<llo_original>
// kernel: tpu_custom_call.1
$region0: #{tpu_custom_call.1}
  #allocation0 [shape = 'u32[]', space=smem, size = 0x4, offset = 0x4, fixed_abs, tag = 'smem constant byte address 0x4 - core index']
  #allocation1 [shape = 'u32[144,128]{1,0:T(1,128)}', space=vmem, size = 0x12000, scoped, tag = 'internal scratch']
  #allocation2 [shape = 'f32[8,128]{1,0:T(8,128)}', space=vmem, size = 0x1000, scoped, tag = 'scratch operand']
  #allocation3 [shape = 'f32[8,128]{1,0:T(8,128)}', space=vmem, size = 0x1000, scoped, tag = 'scratch operand']
  #allocation4 [shape = 'f32[1,128]{1,0:T(1,128)}', space=vmem, size = 0x200, scoped, tag = 'scratch operand']
  #allocation5 [shape = 'f32[1,128]{1,0:T(1,128)}', space=vmem, size = 0x200, scoped, tag = 'scratch operand']
  %s0 = inlined_call_operand.hbm [shape: f32[8,128], index: 0, kind: input, shape index: {}]
  %s1 = inlined_call_operand.hbm [shape: f32[8,8], index: 1, kind: input, shape index: {}]
  %s2 = inlined_call_operand.hbm [shape: f32[128,128], index: 2, kind: input, shape index: {}]
  %s3 = inlined_call_operand.vmem [shape: f32[1,128], index: 3, kind: input, shape index: {}]
  %s4 = inlined_call_operand.vmem [shape: f32[1,128], index: 4, kind: input, shape index: {}]
  %s5 = inlined_call_operand.hbm [shape: f32[8,128], index: 5, kind: output, shape index: {}]
  %s6 = sld [smem:[#allocation0]]
  $region81: #{tpu_custom_call.1} parent=0
    _
  %s8 = ssub.s32 1, %s6
  %s9 = scalar_select 0, %s8, %s6
  $region1: #{tpu_custom_call.1} parent=0
    #allocation6 [shape = 'u8[4096]{0}', space=vmem, size = 0x1000, scoped, tag = 'input window, operand 0, single buffered']
    #allocation7 [shape = 's32[2]{0}', space=sflag, size = 0x8, scoped, tag = 'scoped memory for tpu_custom_call.1']
    #allocation8 [shape = 's32[2]{0}', space=sflag, size = 0x8, scoped, tag = 'scoped memory for tpu_custom_call.1']
    #allocation9 [shape = 'u8[8192]{0}', space=vmem, size = 0x2000, scoped, tag = 'input window, operand 1']
    #allocation10 [shape = 's32[2]{0}', space=sflag, size = 0x8, scoped, tag = 'scoped memory for tpu_custom_call.1']
    #allocation11 [shape = 'u8[65536]{0}', space=vmem, size = 0x10000, scoped, tag = 'input window, operand 2, single buffered']
    #allocation12 [shape = 'u8[8192]{0}', space=vmem, size = 0x2000, scoped, tag = 'output window, operand 0']
    %10 = vsyncpa [#allocation7], 0
    %11 = vsyncpa [#allocation10], 0
    %s12 = scalar_lea.sflag [#allocation10], 1
    %13 = vsyncpa %s12, 0
    %14 = vsyncpa [#allocation8], 0
    %s15 = scalar_lea.sflag [#allocation8], 1
    %16 = vsyncpa %s15, 0
    loop: start=0, step=1, limit=4
    $region2: #{tpu_custom_call.1} parent=1 // loop_pre_header
      _
    $region3: #{tpu_custom_call.1} parent=1 // loop_header
      %s18 = sphi 0, %s22
      %p19 = scmp.ge.s32.totalorder %s18, 4
      %s25 = sphi 0, %s37
      %s26 = sphi 0, %s33
      %s27 = sphi 0, %s25
      %s28 = sphi 0, %s26
      %s29 = sphi 0, %s27
      %s30 = sphi 0, %s28
      %s38 = sphi 0, %s38
      %s40 = sphi 0, %s38
      %s41 = sphi 0, %s40
      %s55 = sphi 0, %s41
      %s65 = sphi 0, %s67
      %s68 = sphi 0, %s65
      %s69 = sphi 0, %s68
      %s85 = sphi 0, %s69
      %s89 = sphi 0, %s89
      %s91 = sphi 0, %s89
      %s92 = sphi 0, %s91
      %s106 = sphi 0, %s92
      %s110 = sphi 0, %s110
      %s112 = sphi 0, %s110
      %s113 = sphi 0, %s112
      %s127 = sphi 0, %s113
      %s131 = sphi 0, %s131
      %s133 = sphi 0, %s131
      %s134 = sphi 0, %s133
      %s148 = sphi 0, %s134
      %s156 = sphi 0, %s158
      %s159 = sphi 0, %s156
      %s160 = sphi 0, %s159
      %s176 = sphi 0, %s160
    $region4: #{tpu_custom_call.1} parent=1 // loop_header_branch
      %21 = sbr.rel (%p19) target = $region8
    $region5: #{tpu_custom_call.1} parent=1 // loop_body
      %s23 = ssub.s32 %s18, 1
      %s24 = ssub.s32 %s18, 2
      %s31 = sadd.s32 1, %s26
      %p32 = scmp.ge.s32.totalorder %s31, 1
      %s33 = scalar_select %p32, 0, %s31
      %s34 = sadd.s32 1, %s25
      %s35 = scalar_select %p32, %s34, %s25
      %p36 = scmp.ge.s32.totalorder %s35, 2
      %s37 = scalar_select %p36, 0, %s35
      %s39 = sadd.s32 %s38, 1
      %p42 = scmp.eq.s32.totalorder %s18, 1
      %p43 = scmp.ne.s32.totalorder %s38, %s40
      %p44 = scmp.eq.s32.totalorder %s18, 0
      %p45 = por %p43, %p44
      %p46 = scmp.ne.s32.totalorder %s38, %s40
      %p47 = scmp.eq.s32.totalorder %s23, 1
      %p48 = por %p46, %p47
      %p49 = scmp.ne.s32.totalorder %s40, %s41
      %p50 = scmp.eq.s32.totalorder %s23, 0
      %p51 = por %p49, %p50
      %p52 = scmp.ne.s32.totalorder %s40, %s41
      %p53 = scmp.eq.s32.totalorder %s24, 1
      %p54 = por %p52, %p53
      %p56 = scmp.ne.s32.totalorder %s41, %s55
      %p57 = scmp.eq.s32.totalorder %s24, 0
      %p58 = por %p56, %p57
      %s59 = ssub.s32 1, %s25
      %s60 = smul.u32 %s26, %s59
      %s61 = ssub.s32 1, %s37
      %s62 = smul.u32 %s33, %s61
      %s63 = ssub.s32 %s60, %s62
      %p64 = scmp.eq.s32.totalorder %s63, 0
      %s66 = sadd.s32 %s65, 1
      %s67 = scalar_select %p64, %s65, %s66
      %p70 = pneg %p64
      %p71 = scmp.eq.s32.totalorder %s18, 1
      %p72 = por %p70, %p71
      %p73 = scmp.ne.s32.totalorder %s65, %s68
      %p74 = scmp.eq.s32.totalorder %s18, 0
      %p75 = por %p73, %p74
      %p76 = scmp.ne.s32.totalorder %s65, %s68
      %p77 = scmp.eq.s32.totalorder %s23, 1
      %p78 = por %p76, %p77
      %p79 = scmp.ne.s32.totalorder %s68, %s69
      %p80 = scmp.eq.s32.totalorder %s23, 0
      %p81 = por %p79, %p80
      %p82 = scmp.ne.s32.totalorder %s68, %s69
      %p83 = scmp.eq.s32.totalorder %s24, 1
      %p84 = por %p82, %p83
      %p86 = scmp.ne.s32.totalorder %s69, %s85
      %p87 = scmp.eq.s32.totalorder %s24, 0
      %p88 = por %p86, %p87
      %s90 = sadd.s32 %s89, 1
      %p93 = scmp.eq.s32.totalorder %s18, 1
      %p94 = scmp.ne.s32.totalorder %s89, %s91
      %p95 = scmp.eq.s32.totalorder %s18, 0
      %p96 = por %p94, %p95
      %p97 = scmp.ne.s32.totalorder %s89, %s91
      %p98 = scmp.eq.s32.totalorder %s23, 1
      %p99 = por %p97, %p98
      %p100 = scmp.ne.s32.totalorder %s91, %s92
      %p101 = scmp.eq.s32.totalorder %s23, 0
      %p102 = por %p100, %p101
      %p103 = scmp.ne.s32.totalorder %s91, %s92
      %p104 = scmp.eq.s32.totalorder %s24, 1
      %p105 = por %p103, %p104
      %p107 = scmp.ne.s32.totalorder %s92, %s106
      %p108 = scmp.eq.s32.totalorder %s24, 0
      %p109 = por %p107, %p108
      %s111 = sadd.s32 %s110, 1
      %p114 = scmp.eq.s32.totalorder %s18, 1
      %p115 = scmp.ne.s32.totalorder %s110, %s112
      %p116 = scmp.eq.s32.totalorder %s18, 0
      %p117 = por %p115, %p116
      %p118 = scmp.ne.s32.totalorder %s110, %s112
      %p119 = scmp.eq.s32.totalorder %s23, 1
      %p120 = por %p118, %p119
      %p121 = scmp.ne.s32.totalorder %s112, %s113
      %p122 = scmp.eq.s32.totalorder %s23, 0
      %p123 = por %p121, %p122
      %p124 = scmp.ne.s32.totalorder %s112, %s113
      %p125 = scmp.eq.s32.totalorder %s24, 1
      %p126 = por %p124, %p125
      %p128 = scmp.ne.s32.totalorder %s113, %s127
      %p129 = scmp.eq.s32.totalorder %s24, 0
      %p130 = por %p128, %p129
      %s132 = sadd.s32 %s131, 1
      %p135 = scmp.eq.s32.totalorder %s18, 1
      %p136 = scmp.ne.s32.totalorder %s131, %s133
      %p137 = scmp.eq.s32.totalorder %s18, 0
      %p138 = por %p136, %p137
      %p139 = scmp.ne.s32.totalorder %s131, %s133
      %p140 = scmp.eq.s32.totalorder %s23, 1
      %p141 = por %p139, %p140
      %p142 = scmp.ne.s32.totalorder %s133, %s134
      %p143 = scmp.eq.s32.totalorder %s23, 0
      %p144 = por %p142, %p143
      %p145 = scmp.ne.s32.totalorder %s133, %s134
      %p146 = scmp.eq.s32.totalorder %s24, 1
      %p147 = por %p145, %p146
      %p149 = scmp.ne.s32.totalorder %s134, %s148
      %p150 = scmp.eq.s32.totalorder %s24, 0
      %p151 = por %p149, %p150
      %s152 = smul.u32 %s26, %s25
      %s153 = smul.u32 %s33, %s37
      %s154 = ssub.s32 %s152, %s153
      %p155 = scmp.eq.s32.totalorder %s154, 0
      %s157 = sadd.s32 %s156, 1
      %s158 = scalar_select %p155, %s156, %s157
      %p161 = pneg %p155
      %p162 = scmp.eq.s32.totalorder %s18, 1
      %p163 = por %p161, %p162
      %p164 = scmp.ne.s32.totalorder %s156, %s159
      %p165 = scmp.eq.s32.totalorder %s18, 0
      %p166 = por %p164, %p165
      %p167 = scmp.ne.s32.totalorder %s156, %s159
      %p168 = scmp.eq.s32.totalorder %s23, 1
      %p169 = por %p167, %p168
      %p170 = scmp.ne.s32.totalorder %s159, %s160
      %p171 = scmp.eq.s32.totalorder %s23, 0
      %p172 = por %p170, %p171
      %p173 = scmp.ne.s32.totalorder %s159, %s160
      %p174 = scmp.eq.s32.totalorder %s24, 1
      %p175 = por %p173, %p174
      %p177 = scmp.ne.s32.totalorder %s160, %s176
      %p178 = scmp.eq.s32.totalorder %s24, 0
      %p179 = por %p177, %p178
      %p180 = scmp.le.s32.totalorder 1, %s18
      %p181 = scmp.lt.s32.totalorder %s18, 3
      %p182 = pnand %p180, %p181
      %p183 = pneg %p182
      // Predicated region
      $region9: #{tpu_custom_call.1} parent=5 // pred_check
        _
      $region10: #{tpu_custom_call.1} parent=5 // pred_check_branch
        %185 = sbr.rel (%p182) target = $region12
      $region11: #{tpu_custom_call.1} parent=5 // pred_region
        %s186 = ssub.s32 %s18, 1
        // Predicated region
        $region13: #{tpu_custom_call.1} parent=11 // pred_check
          %p187 = pneg %p51
        $region14: #{tpu_custom_call.1} parent=11 // pred_check_branch
          %189 = sbr.rel (%p187) target = $region16
        $region15: #{tpu_custom_call.1} parent=11 // pred_region
          %s191 = ssub.s32 128, 128
          %192 = vsyncadd [#allocation7], %s191
          %s194 = sshll.u32 [#allocation6], 4
          %s195 = int_to_ptr.vmem [resolvable:$true] %s194
          %197 = dma.hbm_to_vmem [thread:$0]  %s0, 128, %s195, [#allocation7]
        $region16: #{tpu_custom_call.1} parent=11 // pred_fallthru
          _
        // Predicated region
        $region17: #{tpu_custom_call.1} parent=11 // pred_check
          %p198 = pneg %p102
        $region18: #{tpu_custom_call.1} parent=11 // pred_check_branch
          %200 = sbr.rel (%p198) target = $region20
        $region19: #{tpu_custom_call.1} parent=11 // pred_region
          %s202 = ssub.s32 2048, 2048
          %203 = vsyncadd [#allocation10], %s202
          %s204 = sshll.u32 [#allocation11], 4
          %s205 = int_to_ptr.vmem [resolvable:$true] %s204
          %210 = dma.hbm_to_vmem [thread:$0]  %s2, 2048, %s205, [#allocation10], 128, 128, 8
        $region20: #{tpu_custom_call.1} parent=11 // pred_fallthru
          _
        // Predicated region
        $region21: #{tpu_custom_call.1} parent=11 // pred_check
          %p211 = pneg %p123
        $region22: #{tpu_custom_call.1} parent=11 // pred_check_branch
          %213 = sbr.rel (%p211) target = $region24
        $region23: #{tpu_custom_call.1} parent=11 // pred_region
          _
        $region24: #{tpu_custom_call.1} parent=11 // pred_fallthru
          _
        // Predicated region
        $region25: #{tpu_custom_call.1} parent=11 // pred_check
          %p214 = pneg %p144
        $region26: #{tpu_custom_call.1} parent=11 // pred_check_branch
          %216 = sbr.rel (%p214) target = $region28
        $region27: #{tpu_custom_call.1} parent=11 // pred_region
          _
        $region28: #{tpu_custom_call.1} parent=11 // pred_fallthru
          _
      $region12: #{tpu_custom_call.1} parent=5 // pred_fallthru
        _
      %p217 = scmp.lt.s32.totalorder %s18, 2
      // Predicated region
      $region29: #{tpu_custom_call.1} parent=5 // pred_check
        %p218 = pneg %p217
      $region30: #{tpu_custom_call.1} parent=5 // pred_check_branch
        %220 = sbr.rel (%p218) target = $region32
      $region31: #{tpu_custom_call.1} parent=5 // pred_region
        // Predicated region
        $region33: #{tpu_custom_call.1} parent=31 // pred_check
          %p221 = pneg %p75
        $region34: #{tpu_custom_call.1} parent=31 // pred_check_branch
          %223 = sbr.rel (%p221) target = $region36
        $region35: #{tpu_custom_call.1} parent=31 // pred_region
          %s224 = sand.u32 %s18, 1
          %s225 = scalar_lea.sflag [#allocation10], %s224
          %s226 = sand.u32 %s65, 1
          %s227 = smul.addr %s226, 8
          %s228 = scalar_lea.vmem [#allocation9], %s227
          %s229 = ssub.s32 1, %s25
          %s230 = smul.u32 %s26, %s229
          %s232 = ssub.s32 128, 128
          %233 = vsyncadd %s225, %s232
          %s234 = smul.addr %s230, 128
          %s235 = scalar_lea.hbm %s1, %s234
          %s237 = sshll.u32 %s228, 4
          %s238 = int_to_ptr.vmem [resolvable:$true] %s237
          %240 = dma.hbm_to_vmem [thread:$0]  %s235, 128, %s238, %s225
        $region36: #{tpu_custom_call.1} parent=31 // pred_fallthru
          _
      $region32: #{tpu_custom_call.1} parent=5 // pred_fallthru
        _
      %p241 = scmp.le.s32.totalorder 1, %s18
      %p242 = scmp.lt.s32.totalorder %s18, 3
      %p243 = pnand %p241, %p242
      %p244 = pneg %p243
      // Predicated region
      $region37: #{tpu_custom_call.1} parent=5 // pred_check
        _
      $region38: #{tpu_custom_call.1} parent=5 // pred_check_branch
        %246 = sbr.rel (%p243) target = $region40
      $region39: #{tpu_custom_call.1} parent=5 // pred_region
        %s247 = ssub.s32 %s18, 1
        // Predicated region
        $region41: #{tpu_custom_call.1} parent=39 // pred_check
          %p248 = pneg %p51
        $region42: #{tpu_custom_call.1} parent=39 // pred_check_branch
          %250 = sbr.rel (%p248) target = $region44
        $region43: #{tpu_custom_call.1} parent=39 // pred_region
          %251 = dma.done [#allocation7], 128
        $region44: #{tpu_custom_call.1} parent=39 // pred_fallthru
          _
        %s252 = sand.u32 %s23, 1
        %s253 = scalar_lea.sflag [#allocation10], %s252
        %s254 = sand.u32 %s68, 1
        %s255 = smul.addr %s254, 8
        %s256 = scalar_lea.vmem [#allocation9], %s255
        // Predicated region
        $region45: #{tpu_custom_call.1} parent=39 // pred_check
          %p257 = pneg %p81
        $region46: #{tpu_custom_call.1} parent=39 // pred_check_branch
          %259 = sbr.rel (%p257) target = $region48
        $region47: #{tpu_custom_call.1} parent=39 // pred_region
          %260 = dma.done %s253, 128
        $region48: #{tpu_custom_call.1} parent=39 // pred_fallthru
          _
        // Predicated region
        $region49: #{tpu_custom_call.1} parent=39 // pred_check
          %p261 = pneg %p102
        $region50: #{tpu_custom_call.1} parent=39 // pred_check_branch
          %263 = sbr.rel (%p261) target = $region52
        $region51: #{tpu_custom_call.1} parent=39 // pred_region
          %264 = dma.done [#allocation10], 2048
        $region52: #{tpu_custom_call.1} parent=39 // pred_fallthru
          _
        %p265 = pneg %p51
        %p266 = pneg %p48
        %s267 = sand.u32 %s23, 1
        %s268 = scalar_lea.sflag [#allocation10], %s267
        %s269 = sand.u32 %s68, 1
        %s270 = smul.addr %s269, 8
        %s271 = scalar_lea.vmem [#allocation9], %s270
        %p272 = pneg %p81
        %p273 = pneg %p78
        %p274 = pneg %p102
        %p275 = pneg %p99
        %p276 = pneg %p123
        %p277 = pneg %p120
        %p278 = pneg %p144
        %p279 = pneg %p141
        %p280 = pneg %p172
        %p281 = pneg %p169
        %s282 = sand.u32 %s159, 1
        %s283 = scalar_lea.sflag [#allocation8], %s282
        %s284 = sand.u32 %s159, 1
        %s285 = smul.addr %s284, 8
        %s286 = scalar_lea.vmem [#allocation12], %s285
        %s287 = ssub.s32 1, %s27
        %s288 = smul.u32 %s28, %s287
        %s289 = smul.u32 %s28, %s27
        %s290 = smul.u32 %s28, 8
        %p291 = scmp.eq.s32.totalorder %s27, 0
        %p292 = scmp.eq.s32.totalorder %s28, 0
        %p293 = pnand %p291, %p292
        %p294 = pneg %p293
        // Predicated region
        $region53: #{tpu_custom_call.1} parent=39 // pred_check
          _
        $region54: #{tpu_custom_call.1} parent=39 // pred_check_branch
          %296 = sbr.rel (%p293) target = $region56
        $region55: #{tpu_custom_call.1} parent=39 // pred_region
          %v297 = vld [vmem:[#allocation6] sm:$0xff]
          %v298 = vld [vmem:[#allocation11] sm:$0xff]
          %v299 = vld [vmem:[#allocation11 + $0x8] sm:$0xff]
          %v300 = vld [vmem:[#allocation11 + $0x10] sm:$0xff]
          %v301 = vld [vmem:[#allocation11 + $0x18] sm:$0xff]
          %v302 = vld [vmem:[#allocation11 + $0x20] sm:$0xff]
          %v303 = vld [vmem:[#allocation11 + $0x28] sm:$0xff]
          %v304 = vld [vmem:[#allocation11 + $0x30] sm:$0xff]
          %v305 = vld [vmem:[#allocation11 + $0x38] sm:$0xff]
          %v306 = vld [vmem:[#allocation11 + $0x40] sm:$0xff]
          %v307 = vld [vmem:[#allocation11 + $0x48] sm:$0xff]
          %v308 = vld [vmem:[#allocation11 + $0x50] sm:$0xff]
          %v309 = vld [vmem:[#allocation11 + $0x58] sm:$0xff]
          %v310 = vld [vmem:[#allocation11 + $0x60] sm:$0xff]
          %v311 = vld [vmem:[#allocation11 + $0x68] sm:$0xff]
          %v312 = vld [vmem:[#allocation11 + $0x70] sm:$0xff]
          %v313 = vld [vmem:[#allocation11 + $0x78] sm:$0xff]
          %314 = vmatprep.subr.mxu0 0.0
          %315 = vmatpush1.msra.mxu0 %v298
          %316 = vmatprep.subr.mxu0 0.0
          %317 = vmatpush1.msra.mxu0 %v299
          %318 = vmatprep.subr.mxu0 0.0
          %319 = vmatpush1.msra.mxu0 %v300
          %320 = vmatprep.subr.mxu0 0.0
          %321 = vmatpush1.msra.mxu0 %v301
          %322 = vmatprep.subr.mxu0 0.0
          %323 = vmatpush1.msra.mxu0 %v302
          %324 = vmatprep.subr.mxu0 0.0
          %325 = vmatpush1.msra.mxu0 %v303
          %326 = vmatprep.subr.mxu0 0.0
          %327 = vmatpush1.msra.mxu0 %v304
          %328 = vmatprep.subr.mxu0 0.0
          %329 = vmatpush1.msra.mxu0 %v305
          %330 = vmatprep.subr.mxu0 0.0
          %331 = vmatpush1.msra.mxu0 %v306
          %332 = vmatprep.subr.mxu0 0.0
          %333 = vmatpush1.msra.mxu0 %v307
          %334 = vmatprep.subr.mxu0 0.0
          %335 = vmatpush1.msra.mxu0 %v308
          %336 = vmatprep.subr.mxu0 0.0
          %337 = vmatpush1.msra.mxu0 %v309
          %338 = vmatprep.subr.mxu0 0.0
          %339 = vmatpush1.msra.mxu0 %v310
          %340 = vmatprep.subr.mxu0 0.0
          %341 = vmatpush1.msra.mxu0 %v311
          %342 = vmatprep.subr.mxu0 0.0
          %343 = vmatpush1.msra.mxu0 %v312
          %344 = vmatprep.subr.mxu0 0.0
          %345 = vmatpush1.msra.mxu0 %v313
          %346 = vmatprep.subr.mxu0 0.0
          %347 = vmatpush1.msra.mxu0 0.0
          %348 = vmatprep.subr.mxu0 0.0
          %349 = vmatpush1.msra.mxu0 0.0
          %350 = vmatprep.subr.mxu0 0.0
          %351 = vmatpush1.msra.mxu0 0.0
          %352 = vmatprep.subr.mxu0 0.0
          %353 = vmatpush1.msra.mxu0 0.0
          %354 = vmatprep.subr.mxu0 0.0
          %355 = vmatpush1.msra.mxu0 0.0
          %356 = vmatprep.subr.mxu0 0.0
          %357 = vmatpush1.msra.mxu0 0.0
          %358 = vmatprep.subr.mxu0 0.0
          %359 = vmatpush1.msra.mxu0 0.0
          %360 = vmatprep.subr.mxu0 0.0
          %361 = vmatpush1.msra.mxu0 0.0
          %362 = vmatprep.subr.mxu0 0.0
          %363 = vmatpush1.msra.mxu0 0.0
          %364 = vmatprep.subr.mxu0 0.0
          %365 = vmatpush1.msra.mxu0 0.0
          %366 = vmatprep.subr.mxu0 0.0
          %367 = vmatpush1.msra.mxu0 0.0
          %368 = vmatprep.subr.mxu0 0.0
          %369 = vmatpush1.msra.mxu0 0.0
          %370 = vmatprep.subr.mxu0 0.0
          %371 = vmatpush1.msra.mxu0 0.0
          %372 = vmatprep.subr.mxu0 0.0
          %373 = vmatpush1.msra.mxu0 0.0
          %374 = vmatprep.subr.mxu0 0.0
          %375 = vmatpush1.msra.mxu0 0.0
          %376 = vmatprep.subr.mxu0 0.0
          %377 = vmatpush1.msra.mxu0 0.0
          %378 = vmatprep.mubr.f32.mxu0 0.0
          %379 = vmatmul.mubr.f32.gmra.mrb[0].mxu0 %v297
          %v380 = vpop.f32.mrb[0].mxu0
          %v381 = vadd.f32 0.0, %v380
          %v382 = vpop.f32.mrb[0].mxu0
          %383 = vdwg.mxu0
          %384 = vst [vmem:[#allocation2] sm:$0xff] %v381
        $region56: #{tpu_custom_call.1} parent=39 // pred_fallthru
          _
        // Predicated region
        $region57: #{tpu_custom_call.1} parent=39 // pred_check
          %p385 = pneg %p291
        $region58: #{tpu_custom_call.1} parent=39 // pred_check_branch
          %387 = sbr.rel (%p385) target = $region60
        $region59: #{tpu_custom_call.1} parent=39 // pred_region
          %v388 = vld [vmem:[%s256] sm:$0xff]
          %v389 = vld [vmem:[#allocation2] sm:$0xff]
          %vm390 = vcmask 64512
          %v392 = vsel %vm390, %v388, 0
          %394 = vmatprep.subr.mxu0 0.0
          %395 = vmatpush1.msra.mxu0 %v389
          %396 = vmatprep.subr.mxu0 0.0
          %397 = vmatpush1.msra.mxu0 0.0
          %398 = vmatprep.subr.mxu0 0.0
          %399 = vmatpush1.msra.mxu0 0.0
          %400 = vmatprep.subr.mxu0 0.0
          %401 = vmatpush1.msra.mxu0 0.0
          %402 = vmatprep.subr.mxu0 0.0
          %403 = vmatpush1.msra.mxu0 0.0
          %404 = vmatprep.subr.mxu0 0.0
          %405 = vmatpush1.msra.mxu0 0.0
          %406 = vmatprep.subr.mxu0 0.0
          %407 = vmatpush1.msra.mxu0 0.0
          %408 = vmatprep.subr.mxu0 0.0
          %409 = vmatpush1.msra.mxu0 0.0
          %410 = vmatprep.subr.mxu0 0.0
          %411 = vmatpush1.msra.mxu0 0.0
          %412 = vmatprep.subr.mxu0 0.0
          %413 = vmatpush1.msra.mxu0 0.0
          %414 = vmatprep.subr.mxu0 0.0
          %415 = vmatpush1.msra.mxu0 0.0
          %416 = vmatprep.subr.mxu0 0.0
          %417 = vmatpush1.msra.mxu0 0.0
          %418 = vmatprep.subr.mxu0 0.0
          %419 = vmatpush1.msra.mxu0 0.0
          %420 = vmatprep.subr.mxu0 0.0
          %421 = vmatpush1.msra.mxu0 0.0
          %422 = vmatprep.subr.mxu0 0.0
          %423 = vmatpush1.msra.mxu0 0.0
          %424 = vmatprep.subr.mxu0 0.0
          %425 = vmatpush1.msra.mxu0 0.0
          %426 = vmatprep.subr.mxu0 0.0
          %427 = vmatpush1.msra.mxu0 0.0
          %428 = vmatprep.subr.mxu0 0.0
          %429 = vmatpush1.msra.mxu0 0.0
          %430 = vmatprep.subr.mxu0 0.0
          %431 = vmatpush1.msra.mxu0 0.0
          %432 = vmatprep.subr.mxu0 0.0
          %433 = vmatpush1.msra.mxu0 0.0
          %434 = vmatprep.subr.mxu0 0.0
          %435 = vmatpush1.msra.mxu0 0.0
          %436 = vmatprep.subr.mxu0 0.0
          %437 = vmatpush1.msra.mxu0 0.0
          %438 = vmatprep.subr.mxu0 0.0
          %439 = vmatpush1.msra.mxu0 0.0
          %440 = vmatprep.subr.mxu0 0.0
          %441 = vmatpush1.msra.mxu0 0.0
          %442 = vmatprep.subr.mxu0 0.0
          %443 = vmatpush1.msra.mxu0 0.0
          %444 = vmatprep.subr.mxu0 0.0
          %445 = vmatpush1.msra.mxu0 0.0
          %446 = vmatprep.subr.mxu0 0.0
          %447 = vmatpush1.msra.mxu0 0.0
          %448 = vmatprep.subr.mxu0 0.0
          %449 = vmatpush1.msra.mxu0 0.0
          %450 = vmatprep.subr.mxu0 0.0
          %451 = vmatpush1.msra.mxu0 0.0
          %452 = vmatprep.subr.mxu0 0.0
          %453 = vmatpush1.msra.mxu0 0.0
          %454 = vmatprep.subr.mxu0 0.0
          %455 = vmatpush1.msra.mxu0 0.0
          %456 = vmatprep.subr.mxu0 0.0
          %457 = vmatpush1.msra.mxu0 0.0
          %458 = vmatprep.mubr.f32.mxu0 0.0
          %459 = vmatmul.mubr.f32.gmra.mrb[0].mxu0 %v392
          %v460 = vpop.f32.mrb[0].mxu0
          %v461 = vadd.f32 0.0, %v460
          %v462 = vpop.f32.mrb[0].mxu0
          %463 = vdwg.mxu0
          %s464 = scalar_lea.vmem [#allocation3], %s290
          %465 = vst [vmem:[%s464] sm:$0xff] %v461
        $region60: #{tpu_custom_call.1} parent=39 // pred_fallthru
          _
        %p466 = scmp.eq.s32.totalorder %s27, 1
        %p467 = pnand %p466, %p292
        %p468 = pneg %p467
        // Predicated region
        $region61: #{tpu_custom_call.1} parent=39 // pred_check
          _
        $region62: #{tpu_custom_call.1} parent=39 // pred_check_branch
          %470 = sbr.rel (%p467) target = $region64
        $region63: #{tpu_custom_call.1} parent=39 // pred_region
          %v471 = vld [vmem:[#allocation3] sm:$0xff]
          %v472 = vrot.slane %v471, 4
          %v473 = vadd.f32 %v471, %v472
          %v474 = vrot.slane %v473, 2
          %v475 = vadd.f32 %v473, %v474
          %v476 = vrot.slane %v475, 1
          %v477 = vadd.f32 %v475, %v476
          %v478 = vmul.f32 %v477, 0.125
          %v479 = vsub.f32 %v471, %v478
          %v480 = vmul.f32 %v479, %v479
          %v481 = vrot.slane %v480, 4
          %v482 = vadd.f32 %v480, %v481
          %v483 = vrot.slane %v482, 2
          %v484 = vadd.f32 %v482, %v483
          %v485 = vrot.slane %v484, 1
          %v486 = vadd.f32 %v484, %v485
          %v487 = vmul.f32 %v486, 0.125
          %488 = vst [vmem:[#allocation4] sm:$0x1] %v478
          %v489 = vadd.f32 %v487, 1e-05
          %v490 = vrsqrt.pop %v489
          %491 = vst [vmem:[#allocation5] sm:$0x1] %v490
        $region64: #{tpu_custom_call.1} parent=39 // pred_fallthru
          _
        // Predicated region
        $region65: #{tpu_custom_call.1} parent=39 // pred_check
          %p492 = pneg %p466
        $region66: #{tpu_custom_call.1} parent=39 // pred_check_branch
          %494 = sbr.rel (%p492) target = $region68
        $region67: #{tpu_custom_call.1} parent=39 // pred_region
          %s495 = scalar_lea.vmem [#allocation3], %s290
          %v496 = vld [vmem:[%s495] sm:$0xff]
          %v497 = vld [vmem:[#allocation4] sm:$0x1]
          %v499 = vlaneseq
          %v500 = vshrl.u32 %v499, 7
          %v501 = vsub.s32 0, %v500
          %v502 = vrot.slane %v497, %v501
          %v504 = vsub.f32 %v496, %v502
          %v505 = vld [vmem:[#allocation5] sm:$0x1]
          %v507 = vlaneseq
          %v508 = vshrl.u32 %v507, 7
          %v509 = vsub.s32 0, %v508
          %v510 = vrot.slane %v505, %v509
          %v512 = vmul.f32 %v504, %v510
          %v513 = vld [vmem:[%s3] sm:$0x1]
          %v515 = vlaneseq
          %v516 = vshrl.u32 %v515, 7
          %v517 = vsub.s32 0, %v516
          %v518 = vrot.slane %v513, %v517
          %v520 = vmul.f32 %v512, %v518
          %v521 = vld [vmem:[%s4] sm:$0x1]
          %v523 = vlaneseq
          %v524 = vshrl.u32 %v523, 7
          %v525 = vsub.s32 0, %v524
          %v526 = vrot.slane %v521, %v525
          %v528 = vadd.f32 %v520, %v526
          %v529 = vtanh.pop %v528
          %530 = vst [vmem:[%s286] sm:$0xff] %v529
        $region68: #{tpu_custom_call.1} parent=39 // pred_fallthru
          _
        %s531 = sand.u32 %s159, 1
        %s532 = scalar_lea.sflag [#allocation8], %s531
        %s533 = sand.u32 %s159, 1
        %s534 = smul.addr %s533, 8
        %s535 = scalar_lea.vmem [#allocation12], %s534
        // Predicated region
        $region69: #{tpu_custom_call.1} parent=39 // pred_check
          %p536 = pneg %p169
        $region70: #{tpu_custom_call.1} parent=39 // pred_check_branch
          %538 = sbr.rel (%p536) target = $region72
        $region71: #{tpu_custom_call.1} parent=39 // pred_region
          %s539 = smul.u32 %s28, %s27
          %s541 = ssub.s32 128, 128
          %542 = vsyncadd %s532, %s541
          %s543 = smul.addr %s539, 128
          %s544 = scalar_lea.hbm %s5, %s543
          %s546 = sshll.u32 %s535, 4
          %s547 = int_to_ptr.vmem [resolvable:$true] %s546
          %549 = dma.vmem_to_hbm [thread:$0]  %s547, 128, %s544, %s532
        $region72: #{tpu_custom_call.1} parent=39 // pred_fallthru
          _
      $region40: #{tpu_custom_call.1} parent=5 // pred_fallthru
        _
      %p550 = scmp.le.s32.totalorder 2, %s18
      // Predicated region
      $region73: #{tpu_custom_call.1} parent=5 // pred_check
        %p551 = pneg %p550
      $region74: #{tpu_custom_call.1} parent=5 // pred_check_branch
        %553 = sbr.rel (%p551) target = $region76
      $region75: #{tpu_custom_call.1} parent=5 // pred_region
        %s554 = ssub.s32 %s18, 2
        // Predicated region
        $region77: #{tpu_custom_call.1} parent=75 // pred_check
          %p555 = pneg %p175
        $region78: #{tpu_custom_call.1} parent=75 // pred_check_branch
          %557 = sbr.rel (%p555) target = $region80
        $region79: #{tpu_custom_call.1} parent=75 // pred_region
          %s558 = sand.u32 %s160, 1
          %s559 = scalar_lea.sflag [#allocation8], %s558
          %s560 = sand.u32 %s160, 1
          %s561 = smul.addr %s560, 8
          %s562 = scalar_lea.vmem [#allocation12], %s561
          %563 = dma.done %s559, 128
        $region80: #{tpu_custom_call.1} parent=75 // pred_fallthru
          _
      $region76: #{tpu_custom_call.1} parent=5 // pred_fallthru
        _
    $region6: #{tpu_custom_call.1} parent=1 // loop_footer
      %s22 = sadd.s32 1, %s18
    $region7: #{tpu_custom_call.1} parent=1 // loop_footer_branch
      %17 = sbr.rel target = $region3
    $region8: #{tpu_custom_call.1} parent=1 // loop_exit
      _
    %564 = vsyncpa [#allocation7], 1
    %s565 = scalar_lea.sflag [#allocation7], 1
    %566 = vsyncpa %s565, 1
    %567 = vsyncpa [#allocation10], 1
    %s568 = scalar_lea.sflag [#allocation10], 1
    %569 = vsyncpa %s568, 1
    %570 = vsyncpa [#allocation8], 1
    %s571 = scalar_lea.sflag [#allocation8], 1
    %572 = vsyncpa %s571, 1

</llo_original>
